<compile_context>
chip_gen: v7x
topology: tpu7x:2x2x1
jax: 0.10.0
libtpu: 0.0.40
codegen_flags: <defaults>
</compile_context>

<pallas_src>
import functools
import math

import jax
import jax.numpy as jnp
import numpy as np
from jax.experimental import pallas as pl
from jax.experimental.pallas import tpu as pltpu

_LANE = 128


def _round_up(v, mult):
    return ((v + mult - 1) // mult) * mult


def _vmem_budget():
    """Generation-aware (tile_budget, vmem_limit) in bytes.

    v5e/v6e: 128 MiB physical VMEM -> budget ~38 MiB, limit ~90 MiB.
    v7x:      64 MiB per TensorCore -> budget ~19 MiB, limit ~45 MiB.
    Falls back to conservative (v7x-sized) values if the query is unavailable.
    """
    cap = 64 << 20
    try:
        info_fn = getattr(pltpu, "get_tpu_info", None)
        if info_fn is not None:
            c = getattr(info_fn(), "vmem_capacity_bytes", None)
            if c:
                cap = int(c)
    except Exception:
        pass
    vmem_limit = min(int(cap * 0.70), 100 << 20)
    budget = min(int(cap * 0.30), 48 << 20)
    return budget, vmem_limit


def _choose_tiles(p, m, n, B, x_itemsize, out_itemsize, budget):
    """Pick (tp, tb, tk) respecting the (8, 128) block rules and the VMEM budget."""
    # --- tk: tile the contraction (n) only when one p-slice of W is too big.
    # tk must divide n and be a multiple of 128 so no garbage enters the
    # contraction from edge blocks.
    w_budget = max(budget // 4, 1 << 20)
    tk = n
    if m > 1 and m * n * x_itemsize > w_budget and n > _LANE and n % _LANE == 0:
        best = _LANE
        for c in range(_LANE, n, _LANE):
            if n % c == 0 and m * c * x_itemsize <= w_budget:
                best = c
        tk = best
    # TODO(synk): non-128-divisible n with a huge per-p weight slab would need a
    # masked K edge block; we fall back to tk = n (bigger VMEM) in that case.

    def vmem_need(tp, tb):
        x_blk = tp * tk * tb * x_itemsize
        w_blk = tp * m * tk * x_itemsize
        b_blk = tp * m * 4
        o_blk = tp * m * tb * out_itemsize
        acc = tp * m * tb * 4 if m > 1 else 0                # f32 accumulator scratch
        tmp = tp * tb * 4 * (m if m > 1 else n)              # f32 dot result / reduce temp
        return 2 * (x_blk + w_blk + b_blk + o_blk) + acc + tmp  # x2 = double buffering

    # --- tb: big lane-dense batch tile (measured: 512-1024 ~ 85% of HBM roofline).
    tb = min(_round_up(B, _LANE), 2048)
    while tb > _LANE and vmem_need(1, tb) > budget:
        tb = max(_LANE, ((tb // 2) // _LANE) * _LANE)
    if tb >= B:
        tb = B            # single block covers the whole batch (any B legal then)

    # --- tp: pack as many parallel models per step as the budget allows
    # (amortizes the ~0.35us/grid-step overhead when the per-p matmul is tiny).
    per_p = max(1, vmem_need(1, tb))
    tp = max(1, min(p, 1024, budget // per_p))

    # --- guarantee >= 2 steps on a "parallel" grid axis so both TensorCores of
    # a v7x chip get work (one harmless extra step on single-core chips).
    if -(-p // tp) <= 1 and -(-B // tb) <= 1:
        if B > _LANE:
            tb = max(_LANE, _round_up(-(-B // 2), _LANE))
        elif p >= 2:
            tp = -(-p // 2)
    return tp, tb, tk


def _parallel_linear_kernel(x_ref, w_ref, b_ref, o_ref, acc_ref):
    """One (p-tile, B-tile) output block; K (n) reduction over grid axis 2.

    x_ref: (Tp, Tk, TB)  w_ref: (Tp, m, Tk)  b_ref: (Tp, m, 1) f32
    o_ref: (Tp, m, TB)   acc_ref: (Tp, m, TB) f32 scratch
    """
    k = pl.program_id(2)

    @pl.when(k == 0)
    def _():
        acc_ref[...] = jnp.zeros_like(acc_ref)

    # MXU-canonical batched matmul: LHS (m, Tk) contracts its minor (lane) dim,
    # RHS (Tk, TB) contracts its major (sublane) dim -> no relayout of x or W,
    # and the (Tp, m, TB) result is lane-dense in the batch tile.
    acc_ref[...] += jax.lax.dot_general(
        w_ref[...], x_ref[...],
        dimension_numbers=(((2,), (1,)), ((0,), (0,))),
        preferred_element_type=jnp.float32)

    @pl.when(k == pl.num_programs(2) - 1)
    def _():
        o_ref[...] = (acc_ref[...] + b_ref[...]).astype(o_ref.dtype)


def _parallel_matvec_kernel(x_ref, w_ref, b_ref, o_ref):
    """m == 1 path: multiply in the input dtype, accumulate in f32 on the VPU.

    x_ref: (Tp, n, TB)  w_ref: (Tp, n, 1)  b_ref: (Tp, 1, 1) f32  o_ref: (Tp, 1, TB)
    """
    prod = x_ref[...] * w_ref[...]                                   # (Tp, n, TB)
    y = jnp.sum(prod, axis=1, keepdims=True, dtype=jnp.float32)      # (Tp, 1, TB)
    o_ref[...] = (y + b_ref[...]).astype(o_ref.dtype)


def parallel_linear(x, W, b, *, compute_dtype=None, tile_p=None, tile_b=None,
                    tile_k=None):
    """Pallas implementation of ParallelLinear.forward.

    x: (..., p, n), W: (p, m, n), b: (p, m)  ->  (..., p, m), squeezed on the
    last axis iff m == 1 (matching torch's .squeeze(-1)).
    """
    p, m, n = W.shape
    assert x.shape[-1] == n, (
        f"Input size of model '{n}' does not match input size of data '{x.shape[-1]}'")
    assert x.shape[-2] == p, (
        f"Batch size of model '{p}' does not match batch size of data '{x.shape[-2]}'")

    batch_dims = x.shape[:-2]
    B = int(np.prod(batch_dims)) if batch_dims else 1
    out_dtype = jnp.result_type(x.dtype, W.dtype)

    if compute_dtype is not None:
        # These casts fuse with the layout transpose below under jax.jit, so
        # bf16 compute does not cost an extra HBM pass over x (v5e concern).
        x = x.astype(compute_dtype)
        W = W.astype(compute_dtype)

    xi = jnp.dtype(x.dtype).itemsize
    oi = jnp.dtype(out_dtype).itemsize
    budget, vmem_limit = _vmem_budget()
    tp, tb, tk = _choose_tiles(p, m, n, B, xi, oi, budget)
    if tile_p is not None:
        tp = max(1, min(int(tile_p), p))
    if tile_b is not None:
        tb = B if B <= int(tile_b) else int(tile_b)
        if tb < B:
            assert tb % _LANE == 0, "tile_b must be a multiple of 128 when it tiles B"
    if tile_k is not None and m > 1:
        tk = min(int(tile_k), n)
        if tk < n:
            assert n % tk == 0 and tk % _LANE == 0, (
                "tile_k must divide n and be a multiple of 128 when it tiles n")

    # Lane-dense activation layout (p, n, B): the contraction (n) sits on
    # sublanes and the batch tile (>=128) on lanes, so small n no longer pays
    # 8x lane padding and the dot is MXU-canonical.  The transpose lives
    # outside the kernel; call under jax.jit so XLA fuses it with adjacent ops.
    x_pnb = jnp.transpose(x.reshape((B, p, n)), (1, 2, 0))          # (p, n, B)
    b_f32 = b.reshape((p, m, 1)).astype(jnp.float32)                # f32 bias

    cost = pl.CostEstimate(
        flops=int(2 * B * p * m * n),
        transcendentals=0,
        bytes_accessed=int(B * p * n * xi + p * m * n * xi + p * m * 4
                           + B * p * m * oi))
    params = pltpu.CompilerParams(
        dimension_semantics=(("parallel", "parallel") if m == 1 else
                             ("parallel", "parallel", "arbitrary")),
        vmem_limit_bytes=vmem_limit)

    if m == 1:
        wt = jnp.transpose(W, (0, 2, 1))                            # (p, n, 1)
        grid = (pl.cdiv(p, tp), pl.cdiv(B, tb))
        out_pmB = pl.pallas_call(
            _parallel_matvec_kernel,
            out_shape=jax.ShapeDtypeStruct((p, 1, B), out_dtype),
            grid_spec=pltpu.PrefetchScalarGridSpec(
                num_scalar_prefetch=0,
                grid=grid,
                in_specs=[
                    pl.BlockSpec((tp, n, tb), lambda i, j: (i, 0, j)),   # x
                    pl.BlockSpec((tp, n, 1), lambda i, j: (i, 0, 0)),    # W^T
                    pl.BlockSpec((tp, 1, 1), lambda i, j: (i, 0, 0)),    # bias
                ],
                out_specs=pl.BlockSpec((tp, 1, tb), lambda i, j: (i, 0, j)),
            ),
            compiler_params=params,
            cost_estimate=cost,
        )(x_pnb, wt, b_f32)
    else:
        grid = (pl.cdiv(p, tp), pl.cdiv(B, tb), pl.cdiv(n, tk))
        out_pmB = pl.pallas_call(
            _parallel_linear_kernel,
            out_shape=jax.ShapeDtypeStruct((p, m, B), out_dtype),
            grid_spec=pltpu.PrefetchScalarGridSpec(
                num_scalar_prefetch=0,
                grid=grid,
                in_specs=[
                    pl.BlockSpec((tp, tk, tb), lambda i, j, k: (i, k, j)),  # x
                    pl.BlockSpec((tp, m, tk), lambda i, j, k: (i, 0, k)),   # W
                    pl.BlockSpec((tp, m, 1), lambda i, j, k: (i, 0, 0)),    # bias
                ],
                out_specs=pl.BlockSpec((tp, m, tb), lambda i, j, k: (i, 0, j)),
                scratch_shapes=[pltpu.VMEM((tp, m, tb), jnp.float32)],
            ),
            compiler_params=params,
            cost_estimate=cost,
        )(x_pnb, W, b_f32)

    # (p, m, B) -> (B, p, m) -> original leading batch dims.
    # TODO(synk): for m >= 128, emit (B, p, m) blocks directly and drop this.
    y = jnp.transpose(out_pmB, (2, 0, 1)).reshape(batch_dims + (p, m))
    if m == 1:
        y = jnp.squeeze(y, axis=-1)
    return y


def init_parallel_linear_params(key, n_inputs, n_outputs, n_parallel,
                                dtype=jnp.float32):
    """Deterministic init mimicking reset_parameters (kaiming_uniform a=sqrt(5))."""
    kW, kb = jax.random.split(key)
    fan_in = n_inputs
    gain = math.sqrt(2.0 / (1.0 + 5.0))            # a = sqrt(5)
    w_bound = gain * math.sqrt(3.0 / fan_in)
    b_bound = 1.0 / math.sqrt(fan_in) if fan_in > 0 else 0.0
    W = jax.random.uniform(kW, (n_parallel, n_outputs, n_inputs),
                           dtype=dtype, minval=-w_bound, maxval=w_bound)
    b = jax.random.uniform(kb, (n_parallel, n_outputs),
                           dtype=dtype, minval=-b_bound, maxval=b_bound)
    return W, b


if __name__ == "__main__":
    # Small shapes consistent with the module: batch=2, p=4 parallel models,
    # n=16 inputs, m=8 outputs.
    batch, p, n, m = 2, 4, 16, 8
    key = jax.random.PRNGKey(0)
    kx, kparams, kx3, kbig = jax.random.split(key, 4)

    x = jax.random.normal(kx, (batch, p, n), dtype=jnp.float32)
    W, b = init_parallel_linear_params(kparams, n, m, p)

    # --- main path (f32, tiny shapes, single K block) ---
    y = jax.block_until_ready(jax.jit(parallel_linear)(x, W, b))
    y_ref = jnp.einsum('pmn,bpn->bpm', W, x) + b
    assert y.shape == (batch, p, m), y.shape
    np.testing.assert_allclose(np.asarray(y), np.asarray(y_ref),
                               rtol=1e-5, atol=1e-5)

    # --- B tiling + edge-block clipping (B=300, TB=128 -> 3 tiles) ---
    x3 = jax.random.normal(kx3, (300, p, n), dtype=jnp.float32)
    y3 = jax.block_until_ready(
        jax.jit(functools.partial(parallel_linear, tile_b=128))(x3, W, b))
    y3_ref = jnp.einsum('pmn,bpn->bpm', W, x3) + b
    assert y3.shape == (300, p, m), y3.shape
    np.testing.assert_allclose(np.asarray(y3), np.asarray(y3_ref),
                               rtol=1e-5, atol=1e-5)

    # --- K (n) reduction grid axis with the f32 accumulator (tile_k=128) ---
    pb, mb, nb, Bb = 2, 16, 256, 256
    kxb, kpb = jax.random.split(kbig)
    xb = jax.random.normal(kxb, (Bb, pb, nb), dtype=jnp.float32)
    Wb, bb = init_parallel_linear_params(kpb, nb, mb, pb)
    yb = jax.block_until_ready(
        jax.jit(functools.partial(parallel_linear, tile_b=128, tile_k=128))(xb, Wb, bb))
    yb_ref = (np.einsum('pmn,bpn->bpm',
                        np.asarray(Wb, np.float64), np.asarray(xb, np.float64))
              + np.asarray(bb, np.float64))
    assert yb.shape == (Bb, pb, mb), yb.shape
    np.testing.assert_allclose(np.asarray(yb), yb_ref, rtol=1e-4, atol=1e-4)

    # --- m == 1 squeeze path (VPU sublane reduction, lane-dense x) ---
    W1, b1 = init_parallel_linear_params(kparams, n, 1, p)
    y1 = jax.block_until_ready(jax.jit(parallel_linear)(x, W1, b1))
    y1_ref = (jnp.einsum('pmn,bpn->bpm', W1, x) + b1)[..., 0]
    assert y1.shape == (batch, p), y1.shape
    np.testing.assert_allclose(np.asarray(y1), np.asarray(y1_ref),
                               rtol=1e-5, atol=1e-5)

    # --- bf16 compute path (f32 accumulation), checked against the f32 ref ---
    ybf = jax.block_until_ready(
        jax.jit(functools.partial(parallel_linear,
                                  compute_dtype=jnp.bfloat16))(x, W, b))
    assert ybf.shape == (batch, p, m), ybf.shape
    np.testing.assert_allclose(np.asarray(ybf, dtype=np.float32),
                               np.asarray(y_ref), rtol=5e-2, atol=5e-2)

    print("KERNEL_OK")
</pallas_src>

<mosaic_0001>
module attributes {stable_mosaic.version = 11 : i64} {
  func.func @_parallel_linear_kernel(%arg0: i32, %arg1: i32, %arg2: i32, %arg3: memref<2x16x2xf32, #tpu.memory_space<vmem>>, %arg4: memref<2x8x16xf32, #tpu.memory_space<vmem>>, %arg5: memref<2x8x1xf32, #tpu.memory_space<vmem>>, %arg6: memref<2x8x2xf32, #tpu.memory_space<vmem>>, %arg7: memref<2x8x2xf32, #tpu.memory_space<vmem>>) attributes {dimension_semantics = [#tpu.dimension_semantics<parallel>, #tpu.dimension_semantics<parallel>, #tpu.dimension_semantics<arbitrary>], iteration_bounds = array<i64: 2, 1, 1>, scalar_prefetch = 0 : i64, scratch_operands = 1 : i64, tpu.core_type = #tpu.core_type<tc>, window_params = [{transform_indices = @transform_0, window_bounds = array<i64: 2, 16, 2>}, {transform_indices = @transform_1, window_bounds = array<i64: 2, 8, 16>}, {transform_indices = @transform_2, window_bounds = array<i64: 2, 8, 1>}, {transform_indices = @transform_3, window_bounds = array<i64: 2, 8, 2>}]} {
    %c0_i32 = arith.constant 0 : i32
    %0 = arith.cmpi eq, %arg2, %c0_i32 : i32
    %1 = arith.extui %0 : i1 to i32
    %c0_i32_0 = arith.constant 0 : i32
    %2 = arith.cmpi ne, %1, %c0_i32_0 : i32
    scf.if %2 {
      %cst_14 = arith.constant 0.000000e+00 : f32
      %12 = vector.broadcast %cst_14 : f32 to vector<2x8x2xf32>
      %c0_15 = arith.constant 0 : index
      %c0_16 = arith.constant 0 : index
      %c0_17 = arith.constant 0 : index
      %13 = vector.load %arg7[%c0_15, %c0_16, %c0_17] : memref<2x8x2xf32, #tpu.memory_space<vmem>>, vector<2x8x2xf32>
      tpu.vector_store %arg7[%c0_15, %c0_16, %c0_17], %12 {strides = array<i32>} : memref<2x8x2xf32, #tpu.memory_space<vmem>>, vector<2x8x2xf32>,
    } else {
    }
    %c0 = arith.constant 0 : index
    %c0_1 = arith.constant 0 : index
    %c0_2 = arith.constant 0 : index
    %3 = vector.load %arg7[%c0, %c0_1, %c0_2] : memref<2x8x2xf32, #tpu.memory_space<vmem>>, vector<2x8x2xf32>
    %c0_3 = arith.constant 0 : index
    %c0_4 = arith.constant 0 : index
    %c0_5 = arith.constant 0 : index
    %4 = vector.load %arg4[%c0_3, %c0_4, %c0_5] : memref<2x8x16xf32, #tpu.memory_space<vmem>>, vector<2x8x16xf32>
    %c0_6 = arith.constant 0 : index
    %c0_7 = arith.constant 0 : index
    %c0_8 = arith.constant 0 : index
    %5 = vector.load %arg3[%c0_6, %c0_7, %c0_8] : memref<2x16x2xf32, #tpu.memory_space<vmem>>, vector<2x16x2xf32>
    %cst = arith.constant dense<0.000000e+00> : vector<2x8x2xf32>
    %6 = tpu.matmul %4, %5, %cst {dimension_numbers = #tpu.dot_dimension_numbers<[2], [1], [1], [2], [0, 0, 0, 1, 1, 2], [0], [0]>} : vector<2x8x16xf32>, vector<2x16x2xf32>, vector<2x8x2xf32> -> vector<2x8x2xf32>
    %7 = arith.addf %3, %6 : vector<2x8x2xf32>
    %c0_9 = arith.constant 0 : index
    %c0_10 = arith.constant 0 : index
    %c0_11 = arith.constant 0 : index
    %8 = vector.load %arg7[%c0_9, %c0_10, %c0_11] : memref<2x8x2xf32, #tpu.memory_space<vmem>>, vector<2x8x2xf32>
    tpu.vector_store %arg7[%c0_9, %c0_10, %c0_11], %7 {strides = array<i32>} : memref<2x8x2xf32, #tpu.memory_space<vmem>>, vector<2x8x2xf32>,
    %c0_i32_12 = arith.constant 0 : i32
    %9 = arith.cmpi eq, %arg2, %c0_i32_12 : i32
    %10 = arith.extui %9 : i1 to i32
    %c0_i32_13 = arith.constant 0 : i32
    %11 = arith.cmpi ne, %10, %c0_i32_13 : i32
    scf.if %11 {
      %c0_14 = arith.constant 0 : index
      %c0_15 = arith.constant 0 : index
      %c0_16 = arith.constant 0 : index
      %12 = vector.load %arg7[%c0_14, %c0_15, %c0_16] : memref<2x8x2xf32, #tpu.memory_space<vmem>>, vector<2x8x2xf32>
      %c0_17 = arith.constant 0 : index
      %c0_18 = arith.constant 0 : index
      %c0_19 = arith.constant 0 : index
      %13 = vector.load %arg5[%c0_17, %c0_18, %c0_19] : memref<2x8x1xf32, #tpu.memory_space<vmem>>, vector<2x8x1xf32>
      %14 = vector.broadcast %13 : vector<2x8x1xf32> to vector<2x8x2xf32>
      %15 = arith.addf %12, %14 : vector<2x8x2xf32>
      %c0_20 = arith.constant 0 : index
      %c0_21 = arith.constant 0 : index
      %c0_22 = arith.constant 0 : index
      %16 = vector.load %arg6[%c0_20, %c0_21, %c0_22] : memref<2x8x2xf32, #tpu.memory_space<vmem>>, vector<2x8x2xf32>
      tpu.vector_store %arg6[%c0_20, %c0_21, %c0_22], %15 {strides = array<i32>} : memref<2x8x2xf32, #tpu.memory_space<vmem>>, vector<2x8x2xf32>,
    } else {
    }
    return
  }
  func.func @transform_0(%arg0: i32, %arg1: i32, %arg2: i32) -> (i32, i32, i32) {
    %c0_i32 = arith.constant 0 : i32
    return %arg0, %arg2, %arg1 : i32, i32, i32
  }
  func.func @transform_1(%arg0: i32, %arg1: i32, %arg2: i32) -> (i32, i32, i32) {
    %c0_i32 = arith.constant 0 : i32
    %c0_i32_0 = arith.constant 0 : i32
    return %arg0, %c0_i32, %arg2 : i32, i32, i32
  }
  func.func @transform_2(%arg0: i32, %arg1: i32, %arg2: i32) -> (i32, i32, i32) {
    %c0_i32 = arith.constant 0 : i32
    %c0_i32_0 = arith.constant 0 : i32
    %c0_i32_1 = arith.constant 0 : i32
    return %arg0, %c0_i32, %c0_i32_0 : i32, i32, i32
  }
  func.func @transform_3(%arg0: i32, %arg1: i32, %arg2: i32) -> (i32, i32, i32) {
    %c0_i32 = arith.constant 0 : i32
    %c0_i32_0 = arith.constant 0 : i32
    return %arg0, %c0_i32, %arg1 : i32, i32, i32
  }
}

</mosaic_0001>

<llo_original>
// kernel: parallel_linear.1
$region0: #{parallel_linear.1}
  #allocation0 [shape = 'u32[]', space=smem, size = 0x4, offset = 0x4, fixed_abs, tag = 'smem constant byte address 0x4 - core index']
  #allocation1 [shape = 'u32[144,128]{1,0:T(1,128)}', space=vmem, size = 0x12000, scoped, tag = 'internal scratch']
  #allocation2 [shape = 'f32[2,8,2]{2,1,0:T(8,128)}', space=vmem, size = 0x2000, scoped, tag = 'scratch operand']
  %s0 = inlined_call_operand.vmem [shape: f32[4,16,2], index: 0, kind: input, shape index: {}]
  %s1 = inlined_call_operand.vmem [shape: f32[4,8,16], index: 1, kind: input, shape index: {}]
  %s2 = inlined_call_operand.vmem [shape: f32[4,8,1], index: 2, kind: input, shape index: {}]
  %s3 = inlined_call_operand.vmem [shape: f32[4,8,2], index: 3, kind: output, shape index: {}]
  %s4 = sld [smem:[#allocation0]]
  $region53: #{parallel_linear.1} parent=0
    _
  %s6 = ssub.s32 1, %s4
  %s7 = scalar_select 0, %s6, %s4
  loop: start=0, step=1, limit=4
  $region2: #{parallel_linear.1} parent=0 // loop_pre_header
    _
  $region3: #{parallel_linear.1} parent=0 // loop_header
    %s9 = sphi 0, %s13
    %p10 = scmp.ge.s32.totalorder %s9, 4
    %s16 = sphi 0, %s35
    %s17 = sphi 0, %s31
    %s18 = sphi 0, %s27
    %s19 = sphi 0, %s16
    %s20 = sphi 0, %s17
    %s21 = sphi 0, %s18
    %s22 = sphi 0, %s19
    %s23 = sphi 0, %s20
    %s24 = sphi 0, %s21
    %s42 = sphi 0, %s44
    %s45 = sphi 0, %s42
    %s46 = sphi 0, %s45
    %s62 = sphi 0, %s46
    %s70 = sphi 0, %s72
    %s73 = sphi 0, %s70
    %s74 = sphi 0, %s73
    %s90 = sphi 0, %s74
    %s96 = sphi 0, %s98
    %s99 = sphi 0, %s96
    %s100 = sphi 0, %s99
    %s116 = sphi 0, %s100
    %s124 = sphi 0, %s126
    %s127 = sphi 0, %s124
    %s128 = sphi 0, %s127
    %s144 = sphi 0, %s128
  $region4: #{parallel_linear.1} parent=0 // loop_header_branch
    %12 = sbr.rel (%p10) target = $region8
  $region5: #{parallel_linear.1} parent=0 // loop_body
    %s14 = ssub.s32 %s9, 1
    %s15 = ssub.s32 %s9, 2
    %s25 = sadd.s32 1, %s18
    %p26 = scmp.ge.s32.totalorder %s25, 1
    %s27 = scalar_select %p26, 0, %s25
    %s28 = sadd.s32 1, %s17
    %s29 = scalar_select %p26, %s28, %s17
    %p30 = scmp.ge.s32.totalorder %s29, 1
    %s31 = scalar_select %p30, 0, %s29
    %s32 = sadd.s32 1, %s16
    %s33 = scalar_select %p30, %s32, %s16
    %p34 = scmp.ge.s32.totalorder %s33, 2
    %s35 = scalar_select %p34, 0, %s33
    %s36 = ssub.s32 %s16, %s35
    %s37 = ssub.s32 %s18, %s27
    %s38 = sor.u32 %s36, %s37
    %s39 = ssub.s32 %s17, %s31
    %s40 = sor.u32 %s38, %s39
    %p41 = scmp.eq.s32.totalorder %s40, 0
    %s43 = sadd.s32 %s42, 1
    %s44 = scalar_select %p41, %s42, %s43
    %p47 = pneg %p41
    %p48 = scmp.eq.s32.totalorder %s9, 1
    %p49 = por %p47, %p48
    %p50 = scmp.ne.s32.totalorder %s42, %s45
    %p51 = scmp.eq.s32.totalorder %s9, 0
    %p52 = por %p50, %p51
    %p53 = scmp.ne.s32.totalorder %s42, %s45
    %p54 = scmp.eq.s32.totalorder %s14, 1
    %p55 = por %p53, %p54
    %p56 = scmp.ne.s32.totalorder %s45, %s46
    %p57 = scmp.eq.s32.totalorder %s14, 0
    %p58 = por %p56, %p57
    %p59 = scmp.ne.s32.totalorder %s45, %s46
    %p60 = scmp.eq.s32.totalorder %s15, 1
    %p61 = por %p59, %p60
    %p63 = scmp.ne.s32.totalorder %s46, %s62
    %p64 = scmp.eq.s32.totalorder %s15, 0
    %p65 = por %p63, %p64
    %s66 = ssub.s32 %s16, %s35
    %s67 = ssub.s32 %s18, %s27
    %s68 = sor.u32 %s66, %s67
    %p69 = scmp.eq.s32.totalorder %s68, 0
    %s71 = sadd.s32 %s70, 1
    %s72 = scalar_select %p69, %s70, %s71
    %p75 = pneg %p69
    %p76 = scmp.eq.s32.totalorder %s9, 1
    %p77 = por %p75, %p76
    %p78 = scmp.ne.s32.totalorder %s70, %s73
    %p79 = scmp.eq.s32.totalorder %s9, 0
    %p80 = por %p78, %p79
    %p81 = scmp.ne.s32.totalorder %s70, %s73
    %p82 = scmp.eq.s32.totalorder %s14, 1
    %p83 = por %p81, %p82
    %p84 = scmp.ne.s32.totalorder %s73, %s74
    %p85 = scmp.eq.s32.totalorder %s14, 0
    %p86 = por %p84, %p85
    %p87 = scmp.ne.s32.totalorder %s73, %s74
    %p88 = scmp.eq.s32.totalorder %s15, 1
    %p89 = por %p87, %p88
    %p91 = scmp.ne.s32.totalorder %s74, %s90
    %p92 = scmp.eq.s32.totalorder %s15, 0
    %p93 = por %p91, %p92
    %s94 = ssub.s32 %s16, %s35
    %p95 = scmp.eq.s32.totalorder %s94, 0
    %s97 = sadd.s32 %s96, 1
    %s98 = scalar_select %p95, %s96, %s97
    %p101 = pneg %p95
    %p102 = scmp.eq.s32.totalorder %s9, 1
    %p103 = por %p101, %p102
    %p104 = scmp.ne.s32.totalorder %s96, %s99
    %p105 = scmp.eq.s32.totalorder %s9, 0
    %p106 = por %p104, %p105
    %p107 = scmp.ne.s32.totalorder %s96, %s99
    %p108 = scmp.eq.s32.totalorder %s14, 1
    %p109 = por %p107, %p108
    %p110 = scmp.ne.s32.totalorder %s99, %s100
    %p111 = scmp.eq.s32.totalorder %s14, 0
    %p112 = por %p110, %p111
    %p113 = scmp.ne.s32.totalorder %s99, %s100
    %p114 = scmp.eq.s32.totalorder %s15, 1
    %p115 = por %p113, %p114
    %p117 = scmp.ne.s32.totalorder %s100, %s116
    %p118 = scmp.eq.s32.totalorder %s15, 0
    %p119 = por %p117, %p118
    %s120 = ssub.s32 %s16, %s35
    %s121 = ssub.s32 %s17, %s31
    %s122 = sor.u32 %s120, %s121
    %p123 = scmp.eq.s32.totalorder %s122, 0
    %s125 = sadd.s32 %s124, 1
    %s126 = scalar_select %p123, %s124, %s125
    %p129 = pneg %p123
    %p130 = scmp.eq.s32.totalorder %s9, 1
    %p131 = por %p129, %p130
    %p132 = scmp.ne.s32.totalorder %s124, %s127
    %p133 = scmp.eq.s32.totalorder %s9, 0
    %p134 = por %p132, %p133
    %p135 = scmp.ne.s32.totalorder %s124, %s127
    %p136 = scmp.eq.s32.totalorder %s14, 1
    %p137 = por %p135, %p136
    %p138 = scmp.ne.s32.totalorder %s127, %s128
    %p139 = scmp.eq.s32.totalorder %s14, 0
    %p140 = por %p138, %p139
    %p141 = scmp.ne.s32.totalorder %s127, %s128
    %p142 = scmp.eq.s32.totalorder %s15, 1
    %p143 = por %p141, %p142
    %p145 = scmp.ne.s32.totalorder %s128, %s144
    %p146 = scmp.eq.s32.totalorder %s15, 0
    %p147 = por %p145, %p146
    %p148 = scmp.le.s32.totalorder 1, %s9
    %p149 = scmp.lt.s32.totalorder %s9, 3
    %p150 = pnand %p148, %p149
    %p151 = pneg %p150
    // Predicated region
    $region9: #{parallel_linear.1} parent=5 // pred_check
      _
    $region10: #{parallel_linear.1} parent=5 // pred_check_branch
      %153 = sbr.rel (%p150) target = $region12
    $region11: #{parallel_linear.1} parent=5 // pred_region
      %s154 = ssub.s32 %s9, 1
    $region12: #{parallel_linear.1} parent=5 // pred_fallthru
      _
    %p155 = scmp.lt.s32.totalorder %s9, 2
    // Predicated region
    $region13: #{parallel_linear.1} parent=5 // pred_check
      %p156 = pneg %p155
    $region14: #{parallel_linear.1} parent=5 // pred_check_branch
      %158 = sbr.rel (%p156) target = $region16
    $region15: #{parallel_linear.1} parent=5 // pred_region
      // Predicated region
      $region17: #{parallel_linear.1} parent=15 // pred_check
        %p159 = pneg %p52
      $region18: #{parallel_linear.1} parent=15 // pred_check_branch
        %161 = sbr.rel (%p159) target = $region20
      $region19: #{parallel_linear.1} parent=15 // pred_region
        %s162 = smul.u32 2, %s16
        %s163 = smul.u32 2, %s18
        %p164 = scmp.lt.s32.totalorder %s162, 3
        %s165 = scalar_select %p164, %s162, 3
        %p166 = scmp.lt.s32.totalorder %s163, 1
        %s167 = scalar_select %p166, %s163, 1
        %p168 = scmp.lt.s32.totalorder %s17, 0
        %s169 = scalar_select %p168, %s17, 0
        %s170 = sadd.s32 %s169, %s167
        %s171 = smul.addr %s165, 2
        %s172 = sadd.s32 %s170, %s171
        %s173 = smul.addr %s172, 8
        %s174 = scalar_lea.vmem %s0, %s173
        %s175 = smul.u32 2, %s16
        %s176 = smul.u32 2, %s18
      $region20: #{parallel_linear.1} parent=15 // pred_fallthru
        _
      // Predicated region
      $region21: #{parallel_linear.1} parent=15 // pred_check
        %p177 = pneg %p80
      $region22: #{parallel_linear.1} parent=15 // pred_check_branch
        %179 = sbr.rel (%p177) target = $region24
      $region23: #{parallel_linear.1} parent=15 // pred_region
        %s180 = smul.u32 2, %s16
        %p181 = scmp.lt.s32.totalorder %s180, 3
        %s182 = scalar_select %p181, %s180, 3
        %p183 = scmp.lt.s32.totalorder %s18, 0
        %s184 = scalar_select %p183, %s18, 0
        %s185 = sadd.s32 %s184, %s182
        %s186 = smul.addr %s185, 8
        %s187 = scalar_lea.vmem %s1, %s186
        %s188 = smul.u32 2, %s16
      $region24: #{parallel_linear.1} parent=15 // pred_fallthru
        _
      // Predicated region
      $region25: #{parallel_linear.1} parent=15 // pred_check
        %p189 = pneg %p106
      $region26: #{parallel_linear.1} parent=15 // pred_check_branch
        %191 = sbr.rel (%p189) target = $region28
      $region27: #{parallel_linear.1} parent=15 // pred_region
        %s192 = smul.u32 2, %s16
        %p193 = scmp.lt.s32.totalorder %s192, 3
        %s194 = scalar_select %p193, %s192, 3
        %s195 = smul.addr %s194, 8
        %s196 = scalar_lea.vmem %s2, %s195
        %s197 = smul.u32 2, %s16
      $region28: #{parallel_linear.1} parent=15 // pred_fallthru
        _
    $region16: #{parallel_linear.1} parent=5 // pred_fallthru
      _
    %p198 = scmp.le.s32.totalorder 1, %s9
    %p199 = scmp.lt.s32.totalorder %s9, 3
    %p200 = pnand %p198, %p199
    %p201 = pneg %p200
    // Predicated region
    $region29: #{parallel_linear.1} parent=5 // pred_check
      _
    $region30: #{parallel_linear.1} parent=5 // pred_check_branch
      %203 = sbr.rel (%p200) target = $region32
    $region31: #{parallel_linear.1} parent=5 // pred_region
      %s204 = ssub.s32 %s9, 1
      %s205 = smul.u32 2, %s19
      %s206 = smul.u32 2, %s21
      %p207 = scmp.lt.s32.totalorder %s205, 3
      %s208 = scalar_select %p207, %s205, 3
      %p209 = scmp.lt.s32.totalorder %s206, 1
      %s210 = scalar_select %p209, %s206, 1
      %p211 = scmp.lt.s32.totalorder %s20, 0
      %s212 = scalar_select %p211, %s20, 0
      %s213 = sadd.s32 %s212, %s210
      %s214 = smul.addr %s208, 2
      %s215 = sadd.s32 %s213, %s214
      %s216 = smul.addr %s215, 8
      %s217 = scalar_lea.vmem %s0, %s216
      %p218 = pneg %p58
      %p219 = pneg %p55
      %s220 = smul.u32 2, %s19
      %p221 = scmp.lt.s32.totalorder %s220, 3
      %s222 = scalar_select %p221, %s220, 3
      %p223 = scmp.lt.s32.totalorder %s21, 0
      %s224 = scalar_select %p223, %s21, 0
      %s225 = sadd.s32 %s224, %s222
      %s226 = smul.addr %s225, 8
      %s227 = scalar_lea.vmem %s1, %s226
      %p228 = pneg %p86
      %p229 = pneg %p83
      %s230 = smul.u32 2, %s19
      %p231 = scmp.lt.s32.totalorder %s230, 3
      %s232 = scalar_select %p231, %s230, 3
      %s233 = smul.addr %s232, 8
      %s234 = scalar_lea.vmem %s2, %s233
      %p235 = pneg %p112
      %p236 = pneg %p109
      %p237 = pneg %p140
      %p238 = pneg %p137
      %s239 = smul.u32 2, %s19
      %p240 = scmp.lt.s32.totalorder %s239, 3
      %s241 = scalar_select %p240, %s239, 3
      %p242 = scmp.lt.s32.totalorder %s20, 0
      %s243 = scalar_select %p242, %s20, 0
      %s244 = sadd.s32 %s243, %s241
      %s245 = smul.addr %s244, 8
      %s246 = scalar_lea.vmem %s3, %s245
      %s247 = smul.u32 2, %s19
      %s248 = smul.u32 2, %s21
      %p249 = scmp.lt.s32.totalorder %s247, 3
      %s250 = scalar_select %p249, %s247, 3
      %p251 = scmp.lt.s32.totalorder %s248, 1
      %s252 = scalar_select %p251, %s248, 1
      %p253 = scmp.lt.s32.totalorder %s20, 0
      %s254 = scalar_select %p253, %s20, 0
      %s255 = sadd.s32 %s254, %s252
      %s256 = smul.addr %s250, 2
      %s257 = sadd.s32 %s255, %s256
      %s258 = smul.addr %s257, 8
      %s259 = scalar_lea.vmem %s0, %s258
      %s260 = smul.u32 2, %s19
      %s261 = smul.u32 2, %s21
      %s262 = smul.u32 2, %s19
      %p263 = scmp.lt.s32.totalorder %s262, 3
      %s264 = scalar_select %p263, %s262, 3
      %p265 = scmp.lt.s32.totalorder %s21, 0
      %s266 = scalar_select %p265, %s21, 0
      %s267 = sadd.s32 %s266, %s264
      %s268 = smul.addr %s267, 8
      %s269 = scalar_lea.vmem %s1, %s268
      %s270 = smul.u32 2, %s19
      %s271 = smul.u32 2, %s19
      %p272 = scmp.lt.s32.totalorder %s271, 3
      %s273 = scalar_select %p272, %s271, 3
      %s274 = smul.addr %s273, 8
      %s275 = scalar_lea.vmem %s2, %s274
      %s276 = smul.u32 2, %s19
      %s277 = smul.u32 2, %s19
      %p278 = scmp.lt.s32.totalorder %s277, 3
      %s279 = scalar_select %p278, %s277, 3
      %p280 = scmp.lt.s32.totalorder %s20, 0
      %s281 = scalar_select %p280, %s20, 0
      %s282 = sadd.s32 %s281, %s279
      %s283 = smul.addr %s282, 8
      %s284 = scalar_lea.vmem %s3, %s283
      %s285 = smul.u32 2, %s19
      %p286 = scmp.eq.s32.totalorder %s21, 0
      // Predicated region
      $region33: #{parallel_linear.1} parent=31 // pred_check
        %p287 = pneg %p286
      $region34: #{parallel_linear.1} parent=31 // pred_check_branch
        %289 = sbr.rel (%p287) target = $region36
      $region35: #{parallel_linear.1} parent=31 // pred_region
        %vm290 = vcmask 15360
        %291 = vst.msk [vmem:[#allocation2] sm:$0xff] %vm290, 0.0
        %292 = vst.msk [vmem:[#allocation2 + $0x8] sm:$0xff] %vm290, 0.0
      $region36: #{parallel_linear.1} parent=31 // pred_fallthru
        _
      %v293 = vld [vmem:[#allocation2] sm:$0xff]
      %v294 = vld [vmem:[#allocation2 + $0x8] sm:$0xff]
      %v295 = vld [vmem:[%s269] sm:$0xff]
      %v296 = vld [vmem:[%s269 + $0x8] sm:$0xff]
      %v297 = vld [vmem:[%s259] sm:$0xff]
      %v298 = vld [vmem:[%s259 + $0x8] sm:$0xff]
      %v299 = vld [vmem:[%s259 + $0x10] sm:$0xff]
      %v300 = vld [vmem:[%s259 + $0x18] sm:$0xff]
      %vm301 = vcmask 130048
      %v303 = vsel %vm301, %v295, 0
      %305 = vmatprep.subr.mxu0 0.0
      %306 = vmatpush1.msra.mxu0 %v297
      %307 = vmatprep.subr.mxu0 0.0
      %308 = vmatpush1.msra.mxu0 %v298
      %309 = vmatprep.subr.mxu0 0.0
      %310 = vmatpush1.msra.mxu0 0.0
      %311 = vmatprep.subr.mxu0 0.0
      %312 = vmatpush1.msra.mxu0 0.0
      %313 = vmatprep.subr.mxu0 0.0
      %314 = vmatpush1.msra.mxu0 0.0
      %315 = vmatprep.subr.mxu0 0.0
      %316 = vmatpush1.msra.mxu0 0.0
      %317 = vmatprep.subr.mxu0 0.0
      %318 = vmatpush1.msra.mxu0 0.0
      %319 = vmatprep.subr.mxu0 0.0
      %320 = vmatpush1.msra.mxu0 0.0
      %321 = vmatprep.subr.mxu0 0.0
      %322 = vmatpush1.msra.mxu0 0.0
      %323 = vmatprep.subr.mxu0 0.0
      %324 = vmatpush1.msra.mxu0 0.0
      %325 = vmatprep.subr.mxu0 0.0
      %326 = vmatpush1.msra.mxu0 0.0
      %327 = vmatprep.subr.mxu0 0.0
      %328 = vmatpush1.msra.mxu0 0.0
      %329 = vmatprep.subr.mxu0 0.0
      %330 = vmatpush1.msra.mxu0 0.0
      %331 = vmatprep.subr.mxu0 0.0
      %332 = vmatpush1.msra.mxu0 0.0
      %333 = vmatprep.subr.mxu0 0.0
      %334 = vmatpush1.msra.mxu0 0.0
      %335 = vmatprep.subr.mxu0 0.0
      %336 = vmatpush1.msra.mxu0 0.0
      %337 = vmatprep.subr.mxu0 0.0
      %338 = vmatpush1.msra.mxu0 0.0
      %339 = vmatprep.subr.mxu0 0.0
      %340 = vmatpush1.msra.mxu0 0.0
      %341 = vmatprep.subr.mxu0 0.0
      %342 = vmatpush1.msra.mxu0 0.0
      %343 = vmatprep.subr.mxu0 0.0
      %344 = vmatpush1.msra.mxu0 0.0
      %345 = vmatprep.subr.mxu0 0.0
      %346 = vmatpush1.msra.mxu0 0.0
      %347 = vmatprep.subr.mxu0 0.0
      %348 = vmatpush1.msra.mxu0 0.0
      %349 = vmatprep.subr.mxu0 0.0
      %350 = vmatpush1.msra.mxu0 0.0
      %351 = vmatprep.subr.mxu0 0.0
      %352 = vmatpush1.msra.mxu0 0.0
      %353 = vmatprep.subr.mxu0 0.0
      %354 = vmatpush1.msra.mxu0 0.0
      %355 = vmatprep.subr.mxu0 0.0
      %356 = vmatpush1.msra.mxu0 0.0
      %357 = vmatprep.subr.mxu0 0.0
      %358 = vmatpush1.msra.mxu0 0.0
      %359 = vmatprep.subr.mxu0 0.0
      %360 = vmatpush1.msra.mxu0 0.0
      %361 = vmatprep.subr.mxu0 0.0
      %362 = vmatpush1.msra.mxu0 0.0
      %363 = vmatprep.subr.mxu0 0.0
      %364 = vmatpush1.msra.mxu0 0.0
      %365 = vmatprep.subr.mxu0 0.0
      %366 = vmatpush1.msra.mxu0 0.0
      %367 = vmatprep.subr.mxu0 0.0
      %368 = vmatpush1.msra.mxu0 0.0
      %369 = vmatprep.mubr.f32.mxu0 0.0
      %370 = vmatmul.mubr.f32.gmra.mrb[0].mxu0 %v303
      %v371 = vpop.f32.mrb[0].mxu0
      %v372 = vadd.f32 0.0, %v371
      %v373 = vpop.f32.mrb[0].mxu0
      %374 = vdwg.mxu0
      %v376 = vsel %vm301, %v296, 0
      %378 = vmatprep.subr.mxu0 0.0
      %379 = vmatpush1.msra.mxu0 %v299
      %380 = vmatprep.subr.mxu0 0.0
      %381 = vmatpush1.msra.mxu0 %v300
      %382 = vmatprep.subr.mxu0 0.0
      %383 = vmatpush1.msra.mxu0 0.0
      %384 = vmatprep.subr.mxu0 0.0
      %385 = vmatpush1.msra.mxu0 0.0
      %386 = vmatprep.subr.mxu0 0.0
      %387 = vmatpush1.msra.mxu0 0.0
      %388 = vmatprep.subr.mxu0 0.0
      %389 = vmatpush1.msra.mxu0 0.0
      %390 = vmatprep.subr.mxu0 0.0
      %391 = vmatpush1.msra.mxu0 0.0
      %392 = vmatprep.subr.mxu0 0.0
      %393 = vmatpush1.msra.mxu0 0.0
      %394 = vmatprep.subr.mxu0 0.0
      %395 = vmatpush1.msra.mxu0 0.0
      %396 = vmatprep.subr.mxu0 0.0
      %397 = vmatpush1.msra.mxu0 0.0
      %398 = vmatprep.subr.mxu0 0.0
      %399 = vmatpush1.msra.mxu0 0.0
      %400 = vmatprep.subr.mxu0 0.0
      %401 = vmatpush1.msra.mxu0 0.0
      %402 = vmatprep.subr.mxu0 0.0
      %403 = vmatpush1.msra.mxu0 0.0
      %404 = vmatprep.subr.mxu0 0.0
      %405 = vmatpush1.msra.mxu0 0.0
      %406 = vmatprep.subr.mxu0 0.0
      %407 = vmatpush1.msra.mxu0 0.0
      %408 = vmatprep.subr.mxu0 0.0
      %409 = vmatpush1.msra.mxu0 0.0
      %410 = vmatprep.subr.mxu0 0.0
      %411 = vmatpush1.msra.mxu0 0.0
      %412 = vmatprep.subr.mxu0 0.0
      %413 = vmatpush1.msra.mxu0 0.0
      %414 = vmatprep.subr.mxu0 0.0
      %415 = vmatpush1.msra.mxu0 0.0
      %416 = vmatprep.subr.mxu0 0.0
      %417 = vmatpush1.msra.mxu0 0.0
      %418 = vmatprep.subr.mxu0 0.0
      %419 = vmatpush1.msra.mxu0 0.0
      %420 = vmatprep.subr.mxu0 0.0
      %421 = vmatpush1.msra.mxu0 0.0
      %422 = vmatprep.subr.mxu0 0.0
      %423 = vmatpush1.msra.mxu0 0.0
      %424 = vmatprep.subr.mxu0 0.0
      %425 = vmatpush1.msra.mxu0 0.0
      %426 = vmatprep.subr.mxu0 0.0
      %427 = vmatpush1.msra.mxu0 0.0
      %428 = vmatprep.subr.mxu0 0.0
      %429 = vmatpush1.msra.mxu0 0.0
      %430 = vmatprep.subr.mxu0 0.0
      %431 = vmatpush1.msra.mxu0 0.0
      %432 = vmatprep.subr.mxu0 0.0
      %433 = vmatpush1.msra.mxu0 0.0
      %434 = vmatprep.subr.mxu0 0.0
      %435 = vmatpush1.msra.mxu0 0.0
      %436 = vmatprep.subr.mxu0 0.0
      %437 = vmatpush1.msra.mxu0 0.0
      %438 = vmatprep.subr.mxu0 0.0
      %439 = vmatpush1.msra.mxu0 0.0
      %440 = vmatprep.subr.mxu0 0.0
      %441 = vmatpush1.msra.mxu0 0.0
      %442 = vmatprep.mubr.f32.mxu0 0.0
      %443 = vmatmul.mubr.f32.gmra.mrb[0].mxu0 %v376
      %v444 = vpop.f32.mrb[0].mxu0
      %v445 = vadd.f32 0.0, %v444
      %v446 = vpop.f32.mrb[0].mxu0
      %447 = vdwg.mxu0
      %v448 = vadd.f32 %v293, %v372
      %v449 = vadd.f32 %v294, %v445
      %vm450 = vcmask 15360
      %451 = vst.msk [vmem:[#allocation2] sm:$0xff] %vm450, %v448
      %452 = vst.msk [vmem:[#allocation2 + $0x8] sm:$0xff] %vm450, %v449
      // Predicated region
      $region37: #{parallel_linear.1} parent=31 // pred_check
        %p453 = pneg %p286
      $region38: #{parallel_linear.1} parent=31 // pred_check_branch
        %455 = sbr.rel (%p453) target = $region40
      $region39: #{parallel_linear.1} parent=31 // pred_region
        %v456 = vld [vmem:[#allocation2] sm:$0xff]
        %v457 = vld [vmem:[#allocation2 + $0x8] sm:$0xff]
        %v458 = vld [vmem:[%s275] sm:$0xff]
        %v459 = vld [vmem:[%s275 + $0x8] sm:$0xff]
        %461 = vset.pattern.permute.xlu0 0
        %462 = vperm.xlu0 %461, %v458
        %v463 = vpop.permute.xlu0 %462
        %466 = vset.pattern.permute.xlu0 0
        %467 = vperm.xlu0 %466, %v459
        %v468 = vpop.permute.xlu0 %467
        %v470 = vadd.f32 %v456, %v463
        %v471 = vadd.f32 %v457, %v468
        %472 = vst.msk [vmem:[%s284] sm:$0xff] %vm450, %v470
        %473 = vst.msk [vmem:[%s284 + $0x8] sm:$0xff] %vm450, %v471
      $region40: #{parallel_linear.1} parent=31 // pred_fallthru
        _
      %s474 = smul.u32 2, %s19
      %p475 = scmp.lt.s32.totalorder %s474, 3
      %s476 = scalar_select %p475, %s474, 3
      %p477 = scmp.lt.s32.totalorder %s20, 0
      %s478 = scalar_select %p477, %s20, 0
      %s479 = sadd.s32 %s478, %s476
      %s480 = smul.addr %s479, 8
      %s481 = scalar_lea.vmem %s3, %s480
      // Predicated region
      $region41: #{parallel_linear.1} parent=31 // pred_check
        %p482 = pneg %p137
      $region42: #{parallel_linear.1} parent=31 // pred_check_branch
        %484 = sbr.rel (%p482) target = $region44
      $region43: #{parallel_linear.1} parent=31 // pred_region
        %s485 = smul.u32 2, %s19
      $region44: #{parallel_linear.1} parent=31 // pred_fallthru
        _
    $region32: #{parallel_linear.1} parent=5 // pred_fallthru
      _
    %p486 = scmp.le.s32.totalorder 2, %s9
    // Predicated region
    $region45: #{parallel_linear.1} parent=5 // pred_check
      %p487 = pneg %p486
    $region46: #{parallel_linear.1} parent=5 // pred_check_branch
      %489 = sbr.rel (%p487) target = $region48
    $region47: #{parallel_linear.1} parent=5 // pred_region
      %s490 = ssub.s32 %s9, 2
      // Predicated region
      $region49: #{parallel_linear.1} parent=47 // pred_check
        %p491 = pneg %p143
      $region50: #{parallel_linear.1} parent=47 // pred_check_branch
        %493 = sbr.rel (%p491) target = $region52
      $region51: #{parallel_linear.1} parent=47 // pred_region
        %s494 = smul.u32 2, %s22
        %p495 = scmp.lt.s32.totalorder %s494, 3
        %s496 = scalar_select %p495, %s494, 3
        %p497 = scmp.lt.s32.totalorder %s23, 0
        %s498 = scalar_select %p497, %s23, 0
        %s499 = sadd.s32 %s498, %s496
        %s500 = smul.addr %s499, 8
        %s501 = scalar_lea.vmem %s3, %s500
      $region52: #{parallel_linear.1} parent=47 // pred_fallthru
        _
    $region48: #{parallel_linear.1} parent=5 // pred_fallthru
      _
  $region6: #{parallel_linear.1} parent=0 // loop_footer
    %s13 = sadd.s32 1, %s9
  $region7: #{parallel_linear.1} parent=0 // loop_footer_branch
    %8 = sbr.rel target = $region3
  $region8: #{parallel_linear.1} parent=0 // loop_exit
    _

</llo_original>
